<compile_context>
chip_gen: v7x
topology: tpu7x:2x2x1
jax: 0.10.0
libtpu: 0.0.40
codegen_flags: <defaults>
</compile_context>

<pallas_src>
import functools

import jax
import jax.numpy as jnp
from jax.experimental import pallas as pl
from jax.experimental.pallas import tpu as pltpu


def _film_kernel(x_film, dim,
                 xmean_ref, ct_ref,
                 w0_ref, b0_ref,
                 wf_ref, bf_ref,
                 wo_ref, bo_ref,
                 logits_ref):
    # fc0 on the pre-reduced film/x row and on the full CT modality (MXU, f32 acc).
    x = jnp.dot(xmean_ref[...], w0_ref[...],
                preferred_element_type=jnp.float32) + b0_ref[...]      # (1, dim)
    y = jnp.dot(ct_ref[...], w0_ref[...],
                preferred_element_type=jnp.float32) + b0_ref[...]      # (n_y, dim)

    if x_film:                        # compile-time Python branch (module flag)
        film, target = x, y
    else:
        film, target = y, x

    # single fused fc(film); split gamma/beta halves of the result (cheap slice)
    gb = jnp.dot(film, wf_ref[...],
                 preferred_element_type=jnp.float32) + bf_ref[...]     # (rows, 2*dim)
    gamma = gb[:, :dim]
    beta = gb[:, dim:]

    # FiLM modulation (broadcasts (1, D) against (n_y, D) exactly as in torch)
    output = gamma * target + beta                                     # (n_y, dim)

    # fc_out -> logits (only kernel output; softmax / top-1 done in the wrapper)
    logits_ref[...] = jnp.dot(output, wo_ref[...],
                              preferred_element_type=jnp.float32) + bo_ref[...]


@functools.partial(jax.jit, static_argnames=("x_film",))
def film_forward_batched(data_b, ct_b, params, *, x_film=True):
    """B independent FiLM forwards fused into one pallas_call.

    data_b: (B, n_x, 2*dim)   ct_b: (B, n_y, 2*dim)
    params = (w0 (2D->Din), b0, wf (Din->2D), bf, wo (D->C), bo), weights (in, out).
    Returns (logits (B, n_y, C), Y_prob (B, n_y, C), Y_hat (B, n_y, 1)).
    """
    w0, b0, wf, bf, wo, bo = params
    dim = wo.shape[0]
    out_dim = wo.shape[1]
    two_dim = w0.shape[0]

    data_b = data_b.astype(jnp.float32)
    ct_b = ct_b.astype(jnp.float32)
    B, _, _ = data_b.shape
    n_y = ct_b.shape[1]

    # fc0 is affine, so mean over rows commutes with it: pre-reduce the x
    # modality to one row per sample (saves (n_x-1) rows of MXU work and the
    # in-kernel cross-sublane reduce).  Under jit this fuses with the cast.
    x_mean = jnp.mean(data_b, axis=1, keepdims=True)                   # (B, 1, 2*dim)

    batch_map = lambda b: (b, 0, 0)   # noqa: E731
    const_map = lambda b: (0, 0)      # noqa: E731  (weights resident across grid)

    logits = pl.pallas_call(
        functools.partial(_film_kernel, x_film, dim),
        out_shape=jax.ShapeDtypeStruct((B, n_y, out_dim), jnp.float32),
        grid=(B,),
        in_specs=[
            pl.BlockSpec((None, 1, two_dim), batch_map),     # x_mean (per sample)
            pl.BlockSpec((None, n_y, two_dim), batch_map),   # CT rows (per sample)
            pl.BlockSpec(w0.shape, const_map),
            pl.BlockSpec(b0.shape, const_map),
            pl.BlockSpec(wf.shape, const_map),
            pl.BlockSpec(bf.shape, const_map),
            pl.BlockSpec(wo.shape, const_map),
            pl.BlockSpec(bo.shape, const_map),
        ],
        out_specs=pl.BlockSpec((None, n_y, out_dim), batch_map),
        compiler_params=pltpu.CompilerParams(
            dimension_semantics=("parallel",)),   # shard batch across v7x's 2 TCs
    )(x_mean, ct_b, w0, b0, wf, bf, wo, bo)

    # softmax / top-1 on the tiny (n_y, out_dim) logits in the wrapper (XLA
    # fuses these trivially under jit); keeps lane-sparse stores out of the kernel.
    probs = jax.nn.softmax(logits, axis=-1)
    yhat = jnp.argmax(logits, axis=-1, keepdims=True).astype(jnp.int32)
    return logits, probs, yhat


def film_forward(data, CT_data, params, *, x_film=True):
    """Single-call path matching FiLM.forward (torch.squeeze(dim=0) semantics)."""
    def _squeeze0(a):
        a = jnp.asarray(a)
        if a.ndim == 3:
            if a.shape[0] != 1:
                raise ValueError(
                    "leading batch dim must be 1 (torch.squeeze(dim=0) semantics)")
            return a[0]
        return a

    x_in = _squeeze0(data)
    y_in = _squeeze0(CT_data)
    logits, probs, yhat = film_forward_batched(
        x_in[None], y_in[None], params, x_film=x_film)
    return logits[0], probs[0], yhat[0]


def _reference(data, CT_data, params, *, x_film=True):
    """Pure-JAX reference mirroring the torch op order (mean after fc0)."""
    w0, b0, wf, bf, wo, bo = params
    dim = wo.shape[0]
    x = data[0] if (data.ndim == 3 and data.shape[0] == 1) else data
    y = CT_data[0] if (CT_data.ndim == 3 and CT_data.shape[0] == 1) else CT_data
    x = x @ w0 + b0
    y = y @ w0 + b0
    x = jnp.mean(x, axis=0, keepdims=True)
    film, target = (x, y) if x_film else (y, x)
    gb = film @ wf + bf
    gamma, beta = gb[:, :dim], gb[:, dim:]
    output = gamma * target + beta
    logits = output @ wo + bo
    probs = jax.nn.softmax(logits, axis=1)
    yhat = jnp.argmax(logits, axis=1, keepdims=True).astype(jnp.int32)
    return logits, probs, yhat


def init_params(key, input_dim, dim, output_dim):
    """Deterministic, PyTorch-Linear-like uniform init. Weights stored (in, out)."""
    assert input_dim == dim, "split(fc(film), dim) requires input_dim == dim"
    ks = jax.random.split(key, 6)

    def lin(kw, kb, fan_in, fan_out):
        bound = 1.0 / jnp.sqrt(fan_in)
        w = jax.random.uniform(kw, (fan_in, fan_out), jnp.float32, -bound, bound)
        b = jax.random.uniform(kb, (1, fan_out), jnp.float32, -bound, bound)
        return w, b

    w0, b0 = lin(ks[0], ks[1], 2 * dim, input_dim)   # fc0
    wf, bf = lin(ks[2], ks[3], input_dim, 2 * dim)   # fc
    wo, bo = lin(ks[4], ks[5], dim, output_dim)      # fc_out
    return w0, b0, wf, bf, wo, bo


if __name__ == "__main__":
    input_dim = dim = 32
    output_dim = 2
    n_x, n_y = 8, 8
    B = 2

    key = jax.random.PRNGKey(0)
    k_data, k_ct, k_params = jax.random.split(key, 3)

    data = jax.random.normal(k_data, (1, n_x, 2 * dim), jnp.float32)
    CT_data = jax.random.normal(k_ct, (1, n_y, 2 * dim), jnp.float32)
    params = init_params(k_params, input_dim, dim, output_dim)

    # single-sample path (matches the module's forward), both x_film settings
    for xf in (True, False):
        logits, probs, yhat = film_forward(data, CT_data, params, x_film=xf)
        jax.block_until_ready((logits, probs, yhat))
        rl, rp, ry = _reference(data, CT_data, params, x_film=xf)
        assert jnp.allclose(logits, rl, atol=1e-4, rtol=1e-4)
        assert jnp.allclose(probs, rp, atol=1e-5, rtol=1e-5)
        assert jnp.array_equal(yhat, ry)

    # batched path: B independent forward passes fused into one pallas_call
    data_b = jnp.stack([data[0], 0.5 * data[0] + 0.1])
    ct_b = jnp.stack([CT_data[0], -CT_data[0]])
    lb, pb, yb = film_forward_batched(data_b, ct_b, params, x_film=True)
    jax.block_until_ready((lb, pb, yb))
    for b in range(B):
        rl, rp, ry = _reference(data_b[b][None], ct_b[b][None], params, x_film=True)
        assert jnp.allclose(lb[b], rl, atol=1e-4, rtol=1e-4)
        assert jnp.allclose(pb[b], rp, atol=1e-5, rtol=1e-5)
        assert jnp.array_equal(yb[b], ry)

    print("KERNEL_OK")
</pallas_src>

<mosaic_0001>
module attributes {stable_mosaic.version = 11 : i64} {
  func.func @_film_kernel(%arg0: i32, %arg1: memref<1x1x64xf32, #tpu.memory_space<vmem>>, %arg2: memref<1x8x64xf32, #tpu.memory_space<vmem>>, %arg3: memref<64x32xf32, #tpu.memory_space<vmem>>, %arg4: memref<1x32xf32, #tpu.memory_space<vmem>>, %arg5: memref<32x64xf32, #tpu.memory_space<vmem>>, %arg6: memref<1x64xf32, #tpu.memory_space<vmem>>, %arg7: memref<32x2xf32, #tpu.memory_space<vmem>>, %arg8: memref<1x2xf32, #tpu.memory_space<vmem>>, %arg9: memref<1x8x2xf32, #tpu.memory_space<vmem>>) attributes {dimension_semantics = [#tpu.dimension_semantics<parallel>], iteration_bounds = array<i64: 1>, scalar_prefetch = 0 : i64, scratch_operands = 0 : i64, tpu.core_type = #tpu.core_type<tc>, window_params = [{transform_indices = @transform_0, window_bounds = array<i64: 1, 1, 64>}, {transform_indices = @transform_1, window_bounds = array<i64: 1, 8, 64>}, {pipeline_mode = #tpu.pipeline_mode<synchronous>, transform_indices = @transform_2, window_bounds = array<i64: 64, 32>}, {pipeline_mode = #tpu.pipeline_mode<synchronous>, transform_indices = @transform_3, window_bounds = array<i64: 1, 32>}, {pipeline_mode = #tpu.pipeline_mode<synchronous>, transform_indices = @transform_4, window_bounds = array<i64: 32, 64>}, {pipeline_mode = #tpu.pipeline_mode<synchronous>, transform_indices = @transform_5, window_bounds = array<i64: 1, 64>}, {pipeline_mode = #tpu.pipeline_mode<synchronous>, transform_indices = @transform_6, window_bounds = array<i64: 32, 2>}, {pipeline_mode = #tpu.pipeline_mode<synchronous>, transform_indices = @transform_7, window_bounds = array<i64: 1, 2>}, {transform_indices = @transform_8, window_bounds = array<i64: 1, 8, 2>}]} {
    %c0 = arith.constant 0 : index
    %c0_0 = arith.constant 0 : index
    %c0_1 = arith.constant 0 : index
    %0 = vector.load %arg1[%c0, %c0_0, %c0_1] : memref<1x1x64xf32, #tpu.memory_space<vmem>>, vector<1x1x64xf32>
    %1 = vector.shape_cast %0 : vector<1x1x64xf32> to vector<1x64xf32>
    %c0_2 = arith.constant 0 : index
    %c0_3 = arith.constant 0 : index
    %2 = vector.load %arg3[%c0_2, %c0_3] : memref<64x32xf32, #tpu.memory_space<vmem>>, vector<64x32xf32>
    %cst = arith.constant dense<0.000000e+00> : vector<1x32xf32>
    %3 = tpu.matmul %1, %2, %cst {dimension_numbers = #tpu.dot_dimension_numbers<[1], [0], [0], [1], [0, 0, 1, 1], [], []>} : vector<1x64xf32>, vector<64x32xf32>, vector<1x32xf32> -> vector<1x32xf32>
    %c0_4 = arith.constant 0 : index
    %c0_5 = arith.constant 0 : index
    %4 = vector.load %arg4[%c0_4, %c0_5] : memref<1x32xf32, #tpu.memory_space<vmem>>, vector<1x32xf32>
    %5 = arith.addf %3, %4 : vector<1x32xf32>
    %c0_6 = arith.constant 0 : index
    %c0_7 = arith.constant 0 : index
    %c0_8 = arith.constant 0 : index
    %6 = vector.load %arg2[%c0_6, %c0_7, %c0_8] : memref<1x8x64xf32, #tpu.memory_space<vmem>>, vector<1x8x64xf32>
    %7 = vector.shape_cast %6 : vector<1x8x64xf32> to vector<8x64xf32>
    %c0_9 = arith.constant 0 : index
    %c0_10 = arith.constant 0 : index
    %8 = vector.load %arg3[%c0_9, %c0_10] : memref<64x32xf32, #tpu.memory_space<vmem>>, vector<64x32xf32>
    %cst_11 = arith.constant dense<0.000000e+00> : vector<8x32xf32>
    %9 = tpu.matmul %7, %8, %cst_11 {dimension_numbers = #tpu.dot_dimension_numbers<[1], [0], [0], [1], [0, 0, 1, 1], [], []>} : vector<8x64xf32>, vector<64x32xf32>, vector<8x32xf32> -> vector<8x32xf32>
    %c0_12 = arith.constant 0 : index
    %c0_13 = arith.constant 0 : index
    %10 = vector.load %arg4[%c0_12, %c0_13] : memref<1x32xf32, #tpu.memory_space<vmem>>, vector<1x32xf32>
    %11 = vector.broadcast %10 : vector<1x32xf32> to vector<8x32xf32>
    %12 = arith.addf %9, %11 : vector<8x32xf32>
    %c0_14 = arith.constant 0 : index
    %c0_15 = arith.constant 0 : index
    %13 = vector.load %arg5[%c0_14, %c0_15] : memref<32x64xf32, #tpu.memory_space<vmem>>, vector<32x64xf32>
    %cst_16 = arith.constant dense<0.000000e+00> : vector<1x64xf32>
    %14 = tpu.matmul %5, %13, %cst_16 {dimension_numbers = #tpu.dot_dimension_numbers<[1], [0], [0], [1], [0, 0, 1, 1], [], []>} : vector<1x32xf32>, vector<32x64xf32>, vector<1x64xf32> -> vector<1x64xf32>
    %c0_17 = arith.constant 0 : index
    %c0_18 = arith.constant 0 : index
    %15 = vector.load %arg6[%c0_17, %c0_18] : memref<1x64xf32, #tpu.memory_space<vmem>>, vector<1x64xf32>
    %16 = arith.addf %14, %15 : vector<1x64xf32>
    %17 = vector.extract_strided_slice %16 {offsets = [0, 0], sizes = [1, 32], strides = [1, 1]} : vector<1x64xf32> to vector<1x32xf32>
    %18 = vector.extract_strided_slice %16 {offsets = [0, 32], sizes = [1, 32], strides = [1, 1]} : vector<1x64xf32> to vector<1x32xf32>
    %19 = vector.broadcast %17 : vector<1x32xf32> to vector<8x32xf32>
    %20 = arith.mulf %19, %12 : vector<8x32xf32>
    %21 = vector.broadcast %18 : vector<1x32xf32> to vector<8x32xf32>
    %22 = arith.addf %20, %21 : vector<8x32xf32>
    %c0_19 = arith.constant 0 : index
    %c0_20 = arith.constant 0 : index
    %23 = vector.load %arg7[%c0_19, %c0_20] : memref<32x2xf32, #tpu.memory_space<vmem>>, vector<32x2xf32>
    %cst_21 = arith.constant dense<0.000000e+00> : vector<8x2xf32>
    %24 = tpu.matmul %22, %23, %cst_21 {dimension_numbers = #tpu.dot_dimension_numbers<[1], [0], [0], [1], [0, 0, 1, 1], [], []>} : vector<8x32xf32>, vector<32x2xf32>, vector<8x2xf32> -> vector<8x2xf32>
    %c0_22 = arith.constant 0 : index
    %c0_23 = arith.constant 0 : index
    %25 = vector.load %arg8[%c0_22, %c0_23] : memref<1x2xf32, #tpu.memory_space<vmem>>, vector<1x2xf32>
    %26 = vector.broadcast %25 : vector<1x2xf32> to vector<8x2xf32>
    %27 = arith.addf %24, %26 : vector<8x2xf32>
    %c0_24 = arith.constant 0 : index
    %c0_25 = arith.constant 0 : index
    %c0_26 = arith.constant 0 : index
    %28 = vector.load %arg9[%c0_24, %c0_25, %c0_26] : memref<1x8x2xf32, #tpu.memory_space<vmem>>, vector<1x8x2xf32>
    %29 = vector.shape_cast %28 : vector<1x8x2xf32> to vector<8x2xf32>
    %30 = vector.shape_cast %27 : vector<8x2xf32> to vector<1x8x2xf32>
    tpu.vector_store %arg9[%c0_24, %c0_25, %c0_26], %30 {strides = array<i32>} : memref<1x8x2xf32, #tpu.memory_space<vmem>>, vector<1x8x2xf32>,
    return
  }
  func.func @transform_0(%arg0: i32) -> (i32, i32, i32) {
    %c0_i32 = arith.constant 0 : i32
    %c0_i32_0 = arith.constant 0 : i32
    %c0_i32_1 = arith.constant 0 : i32
    return %arg0, %c0_i32, %c0_i32_0 : i32, i32, i32
  }
  func.func @transform_1(%arg0: i32) -> (i32, i32, i32) {
    %c0_i32 = arith.constant 0 : i32
    %c0_i32_0 = arith.constant 0 : i32
    %c0_i32_1 = arith.constant 0 : i32
    return %arg0, %c0_i32, %c0_i32_0 : i32, i32, i32
  }
  func.func @transform_2(%arg0: i32) -> (i32, i32) {
    %c0_i32 = arith.constant 0 : i32
    %c0_i32_0 = arith.constant 0 : i32
    %c0_i32_1 = arith.constant 0 : i32
    return %c0_i32, %c0_i32_0 : i32, i32
  }
  func.func @transform_3(%arg0: i32) -> (i32, i32) {
    %c0_i32 = arith.constant 0 : i32
    %c0_i32_0 = arith.constant 0 : i32
    %c0_i32_1 = arith.constant 0 : i32
    return %c0_i32, %c0_i32_0 : i32, i32
  }
  func.func @transform_4(%arg0: i32) -> (i32, i32) {
    %c0_i32 = arith.constant 0 : i32
    %c0_i32_0 = arith.constant 0 : i32
    %c0_i32_1 = arith.constant 0 : i32
    return %c0_i32, %c0_i32_0 : i32, i32
  }
  func.func @transform_5(%arg0: i32) -> (i32, i32) {
    %c0_i32 = arith.constant 0 : i32
    %c0_i32_0 = arith.constant 0 : i32
    %c0_i32_1 = arith.constant 0 : i32
    return %c0_i32, %c0_i32_0 : i32, i32
  }
  func.func @transform_6(%arg0: i32) -> (i32, i32) {
    %c0_i32 = arith.constant 0 : i32
    %c0_i32_0 = arith.constant 0 : i32
    %c0_i32_1 = arith.constant 0 : i32
    return %c0_i32, %c0_i32_0 : i32, i32
  }
  func.func @transform_7(%arg0: i32) -> (i32, i32) {
    %c0_i32 = arith.constant 0 : i32
    %c0_i32_0 = arith.constant 0 : i32
    %c0_i32_1 = arith.constant 0 : i32
    return %c0_i32, %c0_i32_0 : i32, i32
  }
  func.func @transform_8(%arg0: i32) -> (i32, i32, i32) {
    %c0_i32 = arith.constant 0 : i32
    %c0_i32_0 = arith.constant 0 : i32
    %c0_i32_1 = arith.constant 0 : i32
    return %arg0, %c0_i32, %c0_i32_0 : i32, i32, i32
  }
}

</mosaic_0001>

<llo_original>
// kernel: film_forward_batched.1
$region0: #{film_forward_batched.1}
  #allocation0 [shape = 'u32[]', space=smem, size = 0x4, offset = 0x4, fixed_abs, tag = 'smem constant byte address 0x4 - core index']
  #allocation1 [shape = 'u32[144,128]{1,0:T(1,128)}', space=vmem, size = 0x12000, scoped, tag = 'internal scratch']
  %s0 = inlined_call_operand.vmem [shape: f32[1,1,64], index: 0, kind: input, shape index: {}]
  %s1 = inlined_call_operand.vmem [shape: f32[1,8,64], index: 1, kind: input, shape index: {}]
  %s2 = inlined_call_operand.vmem [shape: f32[64,32], index: 2, kind: input, shape index: {}]
  %s3 = inlined_call_operand.vmem [shape: f32[1,32], index: 3, kind: input, shape index: {}]
  %s4 = inlined_call_operand.vmem [shape: f32[32,64], index: 4, kind: input, shape index: {}]
  %s5 = inlined_call_operand.vmem [shape: f32[1,64], index: 5, kind: input, shape index: {}]
  %s6 = inlined_call_operand.vmem [shape: f32[32,2], index: 6, kind: input, shape index: {}]
  %s7 = inlined_call_operand.vmem [shape: f32[1,2], index: 7, kind: input, shape index: {}]
  %s8 = inlined_call_operand.vmem [shape: f32[1,8,2], index: 8, kind: output, shape index: {}]
  %s9 = sld [smem:[#allocation0]]
  $region42: #{film_forward_batched.1} parent=0
    _
  %s11 = ssub.s32 1, %s9
  %s12 = scalar_select 0, %s11, %s9
  // Predicated region
  $region2: #{film_forward_batched.1} parent=0 // pred_check
    _
  $region3: #{film_forward_batched.1} parent=0 // pred_check_branch
    %14 = sbr.rel (0) target = $region5
  $region4: #{film_forward_batched.1} parent=0 // pred_region
    _
  $region5: #{film_forward_batched.1} parent=0 // pred_fallthru
    _
  // Predicated region
  $region6: #{film_forward_batched.1} parent=0 // pred_check
    _
  $region7: #{film_forward_batched.1} parent=0 // pred_check_branch
    %16 = sbr.rel (0) target = $region9
  $region8: #{film_forward_batched.1} parent=0 // pred_region
    _
  $region9: #{film_forward_batched.1} parent=0 // pred_fallthru
    _
  // Predicated region
  $region10: #{film_forward_batched.1} parent=0 // pred_check
    _
  $region11: #{film_forward_batched.1} parent=0 // pred_check_branch
    %18 = sbr.rel (0) target = $region13
  $region12: #{film_forward_batched.1} parent=0 // pred_region
    _
  $region13: #{film_forward_batched.1} parent=0 // pred_fallthru
    _
  // Predicated region
  $region14: #{film_forward_batched.1} parent=0 // pred_check
    _
  $region15: #{film_forward_batched.1} parent=0 // pred_check_branch
    %20 = sbr.rel (0) target = $region17
  $region16: #{film_forward_batched.1} parent=0 // pred_region
    _
  $region17: #{film_forward_batched.1} parent=0 // pred_fallthru
    _
  // Predicated region
  $region18: #{film_forward_batched.1} parent=0 // pred_check
    _
  $region19: #{film_forward_batched.1} parent=0 // pred_check_branch
    %22 = sbr.rel (0) target = $region21
  $region20: #{film_forward_batched.1} parent=0 // pred_region
    _
  $region21: #{film_forward_batched.1} parent=0 // pred_fallthru
    _
  // Predicated region
  $region22: #{film_forward_batched.1} parent=0 // pred_check
    _
  $region23: #{film_forward_batched.1} parent=0 // pred_check_branch
    %24 = sbr.rel (0) target = $region25
  $region24: #{film_forward_batched.1} parent=0 // pred_region
    _
  $region25: #{film_forward_batched.1} parent=0 // pred_fallthru
    _
  // Predicated region
  $region26: #{film_forward_batched.1} parent=0 // pred_check
    _
  $region27: #{film_forward_batched.1} parent=0 // pred_check_branch
    %26 = sbr.rel (0) target = $region29
  $region28: #{film_forward_batched.1} parent=0 // pred_region
    _
  $region29: #{film_forward_batched.1} parent=0 // pred_fallthru
    _
  // Predicated region
  $region30: #{film_forward_batched.1} parent=0 // pred_check
    _
  $region31: #{film_forward_batched.1} parent=0 // pred_check_branch
    %28 = sbr.rel (0) target = $region33
  $region32: #{film_forward_batched.1} parent=0 // pred_region
    _
  $region33: #{film_forward_batched.1} parent=0 // pred_fallthru
    _
  %v29 = vld [vmem:[%s0] sm:$0x1]
  %v30 = vld [vmem:[%s2] sm:$0xff]
  %v31 = vld [vmem:[%s2 + $0x8] sm:$0xff]
  %v32 = vld [vmem:[%s2 + $0x10] sm:$0xff]
  %v33 = vld [vmem:[%s2 + $0x18] sm:$0xff]
  %v34 = vld [vmem:[%s2 + $0x20] sm:$0xff]
  %v35 = vld [vmem:[%s2 + $0x28] sm:$0xff]
  %v36 = vld [vmem:[%s2 + $0x30] sm:$0xff]
  %v37 = vld [vmem:[%s2 + $0x38] sm:$0xff]
  %v38 = vld [vmem:[%s3] sm:$0x1]
  %vm39 = vcmask 523264
  %v41 = vsel %vm39, %v29, 0
  %43 = vmatprep.subr.mxu0 0.0
  %44 = vmatpush1.msra.mxu0 %v30
  %45 = vmatprep.subr.mxu0 0.0
  %46 = vmatpush1.msra.mxu0 %v31
  %47 = vmatprep.subr.mxu0 0.0
  %48 = vmatpush1.msra.mxu0 %v32
  %49 = vmatprep.subr.mxu0 0.0
  %50 = vmatpush1.msra.mxu0 %v33
  %51 = vmatprep.subr.mxu0 0.0
  %52 = vmatpush1.msra.mxu0 %v34
  %53 = vmatprep.subr.mxu0 0.0
  %54 = vmatpush1.msra.mxu0 %v35
  %55 = vmatprep.subr.mxu0 0.0
  %56 = vmatpush1.msra.mxu0 %v36
  %57 = vmatprep.subr.mxu0 0.0
  %58 = vmatpush1.msra.mxu0 %v37
  %59 = vmatprep.subr.mxu0 0.0
  %60 = vmatpush1.msra.mxu0 0.0
  %61 = vmatprep.subr.mxu0 0.0
  %62 = vmatpush1.msra.mxu0 0.0
  %63 = vmatprep.subr.mxu0 0.0
  %64 = vmatpush1.msra.mxu0 0.0
  %65 = vmatprep.subr.mxu0 0.0
  %66 = vmatpush1.msra.mxu0 0.0
  %67 = vmatprep.subr.mxu0 0.0
  %68 = vmatpush1.msra.mxu0 0.0
  %69 = vmatprep.subr.mxu0 0.0
  %70 = vmatpush1.msra.mxu0 0.0
  %71 = vmatprep.subr.mxu0 0.0
  %72 = vmatpush1.msra.mxu0 0.0
  %73 = vmatprep.subr.mxu0 0.0
  %74 = vmatpush1.msra.mxu0 0.0
  %75 = vmatprep.subr.mxu0 0.0
  %76 = vmatpush1.msra.mxu0 0.0
  %77 = vmatprep.subr.mxu0 0.0
  %78 = vmatpush1.msra.mxu0 0.0
  %79 = vmatprep.subr.mxu0 0.0
  %80 = vmatpush1.msra.mxu0 0.0
  %81 = vmatprep.subr.mxu0 0.0
  %82 = vmatpush1.msra.mxu0 0.0
  %83 = vmatprep.subr.mxu0 0.0
  %84 = vmatpush1.msra.mxu0 0.0
  %85 = vmatprep.subr.mxu0 0.0
  %86 = vmatpush1.msra.mxu0 0.0
  %87 = vmatprep.subr.mxu0 0.0
  %88 = vmatpush1.msra.mxu0 0.0
  %89 = vmatprep.subr.mxu0 0.0
  %90 = vmatpush1.msra.mxu0 0.0
  %91 = vmatprep.subr.mxu0 0.0
  %92 = vmatpush1.msra.mxu0 0.0
  %93 = vmatprep.subr.mxu0 0.0
  %94 = vmatpush1.msra.mxu0 0.0
  %95 = vmatprep.subr.mxu0 0.0
  %96 = vmatpush1.msra.mxu0 0.0
  %97 = vmatprep.subr.mxu0 0.0
  %98 = vmatpush1.msra.mxu0 0.0
  %99 = vmatprep.subr.mxu0 0.0
  %100 = vmatpush1.msra.mxu0 0.0
  %101 = vmatprep.subr.mxu0 0.0
  %102 = vmatpush1.msra.mxu0 0.0
  %103 = vmatprep.subr.mxu0 0.0
  %104 = vmatpush1.msra.mxu0 0.0
  %105 = vmatprep.subr.mxu0 0.0
  %106 = vmatpush1.msra.mxu0 0.0
  %107 = vmatprep.mubr.f32.mxu0 0.0
  %108 = vmatmul.mubr.f32.gmra.mrb[0].mxu0 %v41
  %v109 = vpop.f32.mrb[0].mxu0
  %v110 = vadd.f32 %v38, %v109
  %v111 = vpop.f32.mrb[0].mxu0
  %112 = vdwg.mxu0
  %v113 = vld [vmem:[%s1] sm:$0xff]
  %v115 = vlaneseq
  %v116 = vshrl.u32 %v115, 7
  %v117 = vsub.s32 0, %v116
  %v118 = vrot.slane %v38, %v117
  %v121 = vsel %vm39, %v113, 0
  %123 = vmatprep.subr.mxu0 0.0
  %124 = vmatpush1.msra.mxu0 %v30
  %125 = vmatprep.subr.mxu0 0.0
  %126 = vmatpush1.msra.mxu0 %v31
  %127 = vmatprep.subr.mxu0 0.0
  %128 = vmatpush1.msra.mxu0 %v32
  %129 = vmatprep.subr.mxu0 0.0
  %130 = vmatpush1.msra.mxu0 %v33
  %131 = vmatprep.subr.mxu0 0.0
  %132 = vmatpush1.msra.mxu0 %v34
  %133 = vmatprep.subr.mxu0 0.0
  %134 = vmatpush1.msra.mxu0 %v35
  %135 = vmatprep.subr.mxu0 0.0
  %136 = vmatpush1.msra.mxu0 %v36
  %137 = vmatprep.subr.mxu0 0.0
  %138 = vmatpush1.msra.mxu0 %v37
  %139 = vmatprep.subr.mxu0 0.0
  %140 = vmatpush1.msra.mxu0 0.0
  %141 = vmatprep.subr.mxu0 0.0
  %142 = vmatpush1.msra.mxu0 0.0
  %143 = vmatprep.subr.mxu0 0.0
  %144 = vmatpush1.msra.mxu0 0.0
  %145 = vmatprep.subr.mxu0 0.0
  %146 = vmatpush1.msra.mxu0 0.0
  %147 = vmatprep.subr.mxu0 0.0
  %148 = vmatpush1.msra.mxu0 0.0
  %149 = vmatprep.subr.mxu0 0.0
  %150 = vmatpush1.msra.mxu0 0.0
  %151 = vmatprep.subr.mxu0 0.0
  %152 = vmatpush1.msra.mxu0 0.0
  %153 = vmatprep.subr.mxu0 0.0
  %154 = vmatpush1.msra.mxu0 0.0
  %155 = vmatprep.subr.mxu0 0.0
  %156 = vmatpush1.msra.mxu0 0.0
  %157 = vmatprep.subr.mxu0 0.0
  %158 = vmatpush1.msra.mxu0 0.0
  %159 = vmatprep.subr.mxu0 0.0
  %160 = vmatpush1.msra.mxu0 0.0
  %161 = vmatprep.subr.mxu0 0.0
  %162 = vmatpush1.msra.mxu0 0.0
  %163 = vmatprep.subr.mxu0 0.0
  %164 = vmatpush1.msra.mxu0 0.0
  %165 = vmatprep.subr.mxu0 0.0
  %166 = vmatpush1.msra.mxu0 0.0
  %167 = vmatprep.subr.mxu0 0.0
  %168 = vmatpush1.msra.mxu0 0.0
  %169 = vmatprep.subr.mxu0 0.0
  %170 = vmatpush1.msra.mxu0 0.0
  %171 = vmatprep.subr.mxu0 0.0
  %172 = vmatpush1.msra.mxu0 0.0
  %173 = vmatprep.subr.mxu0 0.0
  %174 = vmatpush1.msra.mxu0 0.0
  %175 = vmatprep.subr.mxu0 0.0
  %176 = vmatpush1.msra.mxu0 0.0
  %177 = vmatprep.subr.mxu0 0.0
  %178 = vmatpush1.msra.mxu0 0.0
  %179 = vmatprep.subr.mxu0 0.0
  %180 = vmatpush1.msra.mxu0 0.0
  %181 = vmatprep.subr.mxu0 0.0
  %182 = vmatpush1.msra.mxu0 0.0
  %183 = vmatprep.subr.mxu0 0.0
  %184 = vmatpush1.msra.mxu0 0.0
  %185 = vmatprep.subr.mxu0 0.0
  %186 = vmatpush1.msra.mxu0 0.0
  %187 = vmatprep.mubr.f32.mxu0 0.0
  %188 = vmatmul.mubr.f32.gmra.mrb[0].mxu0 %v121
  %v189 = vpop.f32.mrb[0].mxu0
  %v190 = vadd.f32 %v118, %v189
  %v191 = vpop.f32.mrb[0].mxu0
  %192 = vdwg.mxu0
  %v193 = vld [vmem:[%s4] sm:$0xff]
  %v194 = vld [vmem:[%s4 + $0x8] sm:$0xff]
  %v195 = vld [vmem:[%s4 + $0x10] sm:$0xff]
  %v196 = vld [vmem:[%s4 + $0x18] sm:$0xff]
  %v197 = vld [vmem:[%s5] sm:$0x1]
  %vm198 = vcmask 261120
  %v200 = vsel %vm198, %v110, 0
  %202 = vmatprep.subr.mxu0 0.0
  %203 = vmatpush1.msra.mxu0 %v193
  %204 = vmatprep.subr.mxu0 0.0
  %205 = vmatpush1.msra.mxu0 %v194
  %206 = vmatprep.subr.mxu0 0.0
  %207 = vmatpush1.msra.mxu0 %v195
  %208 = vmatprep.subr.mxu0 0.0
  %209 = vmatpush1.msra.mxu0 %v196
  %210 = vmatprep.subr.mxu0 0.0
  %211 = vmatpush1.msra.mxu0 0.0
  %212 = vmatprep.subr.mxu0 0.0
  %213 = vmatpush1.msra.mxu0 0.0
  %214 = vmatprep.subr.mxu0 0.0
  %215 = vmatpush1.msra.mxu0 0.0
  %216 = vmatprep.subr.mxu0 0.0
  %217 = vmatpush1.msra.mxu0 0.0
  %218 = vmatprep.subr.mxu0 0.0
  %219 = vmatpush1.msra.mxu0 0.0
  %220 = vmatprep.subr.mxu0 0.0
  %221 = vmatpush1.msra.mxu0 0.0
  %222 = vmatprep.subr.mxu0 0.0
  %223 = vmatpush1.msra.mxu0 0.0
  %224 = vmatprep.subr.mxu0 0.0
  %225 = vmatpush1.msra.mxu0 0.0
  %226 = vmatprep.subr.mxu0 0.0
  %227 = vmatpush1.msra.mxu0 0.0
  %228 = vmatprep.subr.mxu0 0.0
  %229 = vmatpush1.msra.mxu0 0.0
  %230 = vmatprep.subr.mxu0 0.0
  %231 = vmatpush1.msra.mxu0 0.0
  %232 = vmatprep.subr.mxu0 0.0
  %233 = vmatpush1.msra.mxu0 0.0
  %234 = vmatprep.subr.mxu0 0.0
  %235 = vmatpush1.msra.mxu0 0.0
  %236 = vmatprep.subr.mxu0 0.0
  %237 = vmatpush1.msra.mxu0 0.0
  %238 = vmatprep.subr.mxu0 0.0
  %239 = vmatpush1.msra.mxu0 0.0
  %240 = vmatprep.subr.mxu0 0.0
  %241 = vmatpush1.msra.mxu0 0.0
  %242 = vmatprep.subr.mxu0 0.0
  %243 = vmatpush1.msra.mxu0 0.0
  %244 = vmatprep.subr.mxu0 0.0
  %245 = vmatpush1.msra.mxu0 0.0
  %246 = vmatprep.subr.mxu0 0.0
  %247 = vmatpush1.msra.mxu0 0.0
  %248 = vmatprep.subr.mxu0 0.0
  %249 = vmatpush1.msra.mxu0 0.0
  %250 = vmatprep.subr.mxu0 0.0
  %251 = vmatpush1.msra.mxu0 0.0
  %252 = vmatprep.subr.mxu0 0.0
  %253 = vmatpush1.msra.mxu0 0.0
  %254 = vmatprep.subr.mxu0 0.0
  %255 = vmatpush1.msra.mxu0 0.0
  %256 = vmatprep.subr.mxu0 0.0
  %257 = vmatpush1.msra.mxu0 0.0
  %258 = vmatprep.subr.mxu0 0.0
  %259 = vmatpush1.msra.mxu0 0.0
  %260 = vmatprep.subr.mxu0 0.0
  %261 = vmatpush1.msra.mxu0 0.0
  %262 = vmatprep.subr.mxu0 0.0
  %263 = vmatpush1.msra.mxu0 0.0
  %264 = vmatprep.subr.mxu0 0.0
  %265 = vmatpush1.msra.mxu0 0.0
  %266 = vmatprep.mubr.f32.mxu0 0.0
  %267 = vmatmul.mubr.f32.gmra.mrb[0].mxu0 %v200
  %v268 = vpop.f32.mrb[0].mxu0
  %v269 = vadd.f32 %v197, %v268
  %v270 = vpop.f32.mrb[0].mxu0
  %271 = vdwg.mxu0
  %v272 = vlaneseq
  %v273 = vshrl.u32 %v272, 7
  %v274 = vsub.s32 0, %v273
  %v275 = vrot.slane %v269, %v274
  %v276 = vmul.f32 %v275, %v190
  %278 = vrot.lane.b32.xlu0 %v275, 96
  %v279 = vpop.permute.xlu0 %278
  %v281 = vadd.f32 %v276, %v279
  %v282 = vld [vmem:[%s6] sm:$0xff]
  %v283 = vld [vmem:[%s6 + $0x8] sm:$0xff]
  %v284 = vld [vmem:[%s6 + $0x10] sm:$0xff]
  %v285 = vld [vmem:[%s6 + $0x18] sm:$0xff]
  %v286 = vld [vmem:[%s7] sm:$0x1]
  %v288 = vlaneseq
  %v289 = vshrl.u32 %v288, 7
  %v290 = vsub.s32 0, %v289
  %v291 = vrot.slane %v286, %v290
  %v294 = vsel %vm198, %v281, 0
  %296 = vmatprep.subr.mxu0 0.0
  %297 = vmatpush1.msra.mxu0 %v282
  %298 = vmatprep.subr.mxu0 0.0
  %299 = vmatpush1.msra.mxu0 %v283
  %300 = vmatprep.subr.mxu0 0.0
  %301 = vmatpush1.msra.mxu0 %v284
  %302 = vmatprep.subr.mxu0 0.0
  %303 = vmatpush1.msra.mxu0 %v285
  %304 = vmatprep.subr.mxu0 0.0
  %305 = vmatpush1.msra.mxu0 0.0
  %306 = vmatprep.subr.mxu0 0.0
  %307 = vmatpush1.msra.mxu0 0.0
  %308 = vmatprep.subr.mxu0 0.0
  %309 = vmatpush1.msra.mxu0 0.0
  %310 = vmatprep.subr.mxu0 0.0
  %311 = vmatpush1.msra.mxu0 0.0
  %312 = vmatprep.subr.mxu0 0.0
  %313 = vmatpush1.msra.mxu0 0.0
  %314 = vmatprep.subr.mxu0 0.0
  %315 = vmatpush1.msra.mxu0 0.0
  %316 = vmatprep.subr.mxu0 0.0
  %317 = vmatpush1.msra.mxu0 0.0
  %318 = vmatprep.subr.mxu0 0.0
  %319 = vmatpush1.msra.mxu0 0.0
  %320 = vmatprep.subr.mxu0 0.0
  %321 = vmatpush1.msra.mxu0 0.0
  %322 = vmatprep.subr.mxu0 0.0
  %323 = vmatpush1.msra.mxu0 0.0
  %324 = vmatprep.subr.mxu0 0.0
  %325 = vmatpush1.msra.mxu0 0.0
  %326 = vmatprep.subr.mxu0 0.0
  %327 = vmatpush1.msra.mxu0 0.0
  %328 = vmatprep.subr.mxu0 0.0
  %329 = vmatpush1.msra.mxu0 0.0
  %330 = vmatprep.subr.mxu0 0.0
  %331 = vmatpush1.msra.mxu0 0.0
  %332 = vmatprep.subr.mxu0 0.0
  %333 = vmatpush1.msra.mxu0 0.0
  %334 = vmatprep.subr.mxu0 0.0
  %335 = vmatpush1.msra.mxu0 0.0
  %336 = vmatprep.subr.mxu0 0.0
  %337 = vmatpush1.msra.mxu0 0.0
  %338 = vmatprep.subr.mxu0 0.0
  %339 = vmatpush1.msra.mxu0 0.0
  %340 = vmatprep.subr.mxu0 0.0
  %341 = vmatpush1.msra.mxu0 0.0
  %342 = vmatprep.subr.mxu0 0.0
  %343 = vmatpush1.msra.mxu0 0.0
  %344 = vmatprep.subr.mxu0 0.0
  %345 = vmatpush1.msra.mxu0 0.0
  %346 = vmatprep.subr.mxu0 0.0
  %347 = vmatpush1.msra.mxu0 0.0
  %348 = vmatprep.subr.mxu0 0.0
  %349 = vmatpush1.msra.mxu0 0.0
  %350 = vmatprep.subr.mxu0 0.0
  %351 = vmatpush1.msra.mxu0 0.0
  %352 = vmatprep.subr.mxu0 0.0
  %353 = vmatpush1.msra.mxu0 0.0
  %354 = vmatprep.subr.mxu0 0.0
  %355 = vmatpush1.msra.mxu0 0.0
  %356 = vmatprep.subr.mxu0 0.0
  %357 = vmatpush1.msra.mxu0 0.0
  %358 = vmatprep.subr.mxu0 0.0
  %359 = vmatpush1.msra.mxu0 0.0
  %360 = vmatprep.mubr.f32.mxu0 0.0
  %361 = vmatmul.mubr.f32.gmra.mrb[0].mxu0 %v294
  %v362 = vpop.f32.mrb[0].mxu0
  %v363 = vadd.f32 %v291, %v362
  %v364 = vpop.f32.mrb[0].mxu0
  %365 = vdwg.mxu0
  %vm366 = vcmask 15360
  %367 = vst.msk [vmem:[%s8] sm:$0xff] %vm366, %v363
  // Predicated region
  $region34: #{film_forward_batched.1} parent=0 // pred_check
    _
  $region35: #{film_forward_batched.1} parent=0 // pred_check_branch
    %369 = sbr.rel (0) target = $region37
  $region36: #{film_forward_batched.1} parent=0 // pred_region
    _
  $region37: #{film_forward_batched.1} parent=0 // pred_fallthru
    _
  // Predicated region
  $region38: #{film_forward_batched.1} parent=0 // pred_check
    _
  $region39: #{film_forward_batched.1} parent=0 // pred_check_branch
    %371 = sbr.rel (0) target = $region41
  $region40: #{film_forward_batched.1} parent=0 // pred_region
    _
  $region41: #{film_forward_batched.1} parent=0 // pred_fallthru
    _

</llo_original>
